<compile_context>
chip_gen: v5e
topology: v5e:2x2
jax: 0.10.0
libtpu: 0.0.40
codegen_flags: <defaults>
</compile_context>

<pallas_src>
import jax
import jax.numpy as jnp
from jax import lax
from jax.experimental import pallas as pl
from jax.experimental.pallas import tpu as pltpu

# ----------------------------- static config -----------------------------
N_IMG, C_IN, H, W = 2, 4, 16, 16
C_MID = 8
N_CLASSES = 10
KH = KW = 3
HW = H * W
NHW = N_IMG * HW                  # 512 -> lane axis everywhere
K_TAPS = KH * KW * C_IN           # 36  (im2col contraction dim)
S_BLK_MAX = 16                    # snapshots fused per grid step (conv M up to 128)


# ----------------------------- Pallas kernel -----------------------------
def _hmc_fwd_kernel(taps_ref, convw_ref, fcw_ref, out_ref):
    """One grid step == one block of S_BLK weight snapshots.

    taps_ref : [K_TAPS, NHW]                       im2col tap stack (shared, DMA'd once)
    convw_ref: [S_BLK*C_MID, K_TAPS+1]             per-snapshot conv weight | conv bias
    fcw_ref  : [S_BLK*N_CLASSES, S_BLK*C_MID + 1]  block-diag classifier | classifier bias
    out_ref  : [S_BLK*N_CLASSES, N_IMG]            logits^T for every snapshot in the block
    """
    km = fcw_ref.shape[-1] - 1            # S_BLK * C_MID
    n_img = out_ref.shape[-1]             # N_IMG

    # 3x3 SAME conv for ALL S_BLK snapshots: ONE [S_BLK*C_MID, 36] x [36, 512] matmul.
    w1 = convw_ref[:, 0:K_TAPS]
    b1 = convw_ref[:, K_TAPS:K_TAPS + 1]
    h = jnp.maximum(
        jnp.dot(w1, taps_ref[...], preferred_element_type=jnp.float32) + b1, 0.0)

    # Global average pool per image: exact-f32 lane-range reductions (n_img = 2),
    # done BEFORE the classifier (it is linear, so mean and W2 commute).
    cols = [jnp.sum(h[:, i * HW:(i + 1) * HW], axis=1, keepdims=True)
            for i in range(n_img)]
    pooled = jnp.concatenate(cols, axis=1) * (1.0 / HW)          # [S_BLK*C_MID, n_img]

    # Classifier for ALL S_BLK snapshots: ONE block-diagonal matmul + exact bias add,
    # ONE contiguous store.
    w2 = fcw_ref[:, 0:km]
    b2 = fcw_ref[:, km:km + 1]
    out_ref[...] = (jnp.dot(w2, pooled, preferred_element_type=jnp.float32)
                    + b2).astype(out_ref.dtype)


# ------------------------- batched (stacked-snapshot) wrapper -------------------------
@jax.jit
def _hmc_forward_stacked(x_nchw, w_conv_s, b_conv_s, w_fc_s, b_fc_s):
    """Forward of S weight snapshots in ONE pallas_call (grid over snapshot blocks).

    x_nchw  : [N, C_IN, H, W]
    w_conv_s: [S, C_MID, C_IN, KH, KW]   (torch Conv2d layout, stacked)
    b_conv_s: [S, C_MID]
    w_fc_s  : [S, N_CLASSES, C_MID]      (torch Linear layout, stacked)
    b_fc_s  : [S, N_CLASSES]
    returns : [S, N, N_CLASSES]
    """
    s_count = w_conv_s.shape[0]
    # Snapshot blocking: amortize per-step overhead / DMAs and fatten MXU M, while
    # keeping >= 2 grid steps when S >= 2 so v7x megacore gets balanced work.
    s_blk = 1 if s_count <= 1 else max(1, min(S_BLK_MAX, -(-s_count // 2)))
    n_blocks = -(-s_count // s_blk)
    s_pad = n_blocks * s_blk
    pad = s_pad - s_count

    xf = x_nchw.astype(jnp.float32)

    # --- im2col tap stack [36, 512], built ONCE per call (not per snapshot/step) ---
    xp = jnp.pad(xf, ((0, 0), (0, 0), (1, 1), (1, 1)))
    taps = jnp.stack([xp[:, :, kh:kh + H, kw:kw + W]
                      for kh in range(KH) for kw in range(KW)], axis=0)  # [9,N,C,H,W]
    taps = taps.transpose(0, 2, 1, 3, 4).reshape(K_TAPS, NHW)            # [36, 512]

    # --- conv weights -> matmul-ready [n_blocks, s_blk*C_MID, 37] (weight | bias) ---
    w1 = jnp.transpose(w_conv_s.astype(jnp.float32), (0, 1, 3, 4, 2))
    w1 = w1.reshape(s_count, C_MID, K_TAPS)                   # col t = (kh*KW+kw)*C_IN+c
    b1 = b_conv_s.astype(jnp.float32).reshape(s_count, C_MID, 1)
    convw = jnp.concatenate([w1, b1], axis=-1)
    convw = jnp.pad(convw, ((0, pad), (0, 0), (0, 0)))
    convw = convw.reshape(n_blocks, s_blk * C_MID, K_TAPS + 1)

    # --- classifier -> block-diag [n_blocks, s_blk*NC, s_blk*CM] with bias column ---
    w2 = jnp.pad(w_fc_s.astype(jnp.float32), ((0, pad), (0, 0), (0, 0)))
    w2 = w2.reshape(n_blocks, s_blk, N_CLASSES, C_MID)
    b2 = jnp.pad(b_fc_s.astype(jnp.float32), ((0, pad), (0, 0)))
    b2 = b2.reshape(n_blocks, s_blk * N_CLASSES, 1)
    eye = jnp.eye(s_blk, dtype=jnp.float32)
    w2_bd = w2[:, :, None, :, :] * eye[None, :, :, None, None]          # [nb,s,t,NC,CM]
    w2_bd = w2_bd.transpose(0, 1, 3, 2, 4).reshape(
        n_blocks, s_blk * N_CLASSES, s_blk * C_MID)
    fcw = jnp.concatenate([w2_bd, b2], axis=-1)

    km = s_blk * C_MID
    flops = int(n_blocks * (2 * km * K_TAPS * NHW + 2 * km * NHW
                            + 2 * s_blk * N_CLASSES * (km + 1) * N_IMG))
    bytes_accessed = int(4 * (K_TAPS * NHW
                              + n_blocks * (km * (K_TAPS + 1)
                                            + s_blk * N_CLASSES * (km + 1)
                                            + s_blk * N_CLASSES * N_IMG)))

    out_t = pl.pallas_call(
        _hmc_fwd_kernel,
        out_shape=jax.ShapeDtypeStruct((n_blocks, s_blk * N_CLASSES, N_IMG),
                                       jnp.float32),
        grid=(n_blocks,),
        in_specs=[
            pl.BlockSpec((K_TAPS, NHW), lambda b: (0, 0)),               # shared: 1 DMA
            pl.BlockSpec((None, s_blk * C_MID, K_TAPS + 1), lambda b: (b, 0, 0)),
            pl.BlockSpec((None, s_blk * N_CLASSES, s_blk * C_MID + 1),
                         lambda b: (b, 0, 0)),
        ],
        out_specs=pl.BlockSpec((None, s_blk * N_CLASSES, N_IMG),
                               lambda b: (b, 0, 0)),
        compiler_params=pltpu.CompilerParams(
            dimension_semantics=("parallel",)),     # snapshot blocks shard across TCs
        cost_estimate=pl.CostEstimate(flops=flops, transcendentals=0,
                                      bytes_accessed=bytes_accessed),
    )(taps, convw, fcw)

    out = out_t.reshape(s_pad, N_CLASSES, N_IMG)[:s_count]               # [S, NC, N]
    return jnp.transpose(out, (0, 2, 1))                                 # [S, N, NC]


# ------------------------ HMCModel wrapper semantics ------------------------
class HMCModelPallas:
    """HMCModel: forward == wrapped model forward; snapshot bookkeeping in Python."""

    def __init__(self, params, n_total_batches, n_snapshots=10, warm_up_batches=100):
        assert warm_up_batches < n_total_batches, (
            f"Warm up ({warm_up_batches}) needs to be smaller than total "
            f"batch size ({n_total_batches}).")
        self.snapshot_interval = (n_total_batches - warm_up_batches) // n_snapshots
        assert self.snapshot_interval >= 1, (
            "n_snapshots must not exceed n_total_batches - warm_up_batches")
        self.params = params                 # (w_conv, b_conv, w_fc, b_fc), torch layouts
        self.n_snapshots = n_snapshots
        self.n_total_batches = n_total_batches
        self.warm_up_batches = warm_up_batches
        self.update_step = 0
        self.snapshots = []

    def forward(self, x):
        stacked = tuple(p[None] for p in self.params)          # S == 1
        return _hmc_forward_stacked(x, *stacked)[0]            # [N, N_CLASSES]

    def save_snapshot_step(self):
        self.update_step += 1
        if ((self.update_step - self.warm_up_batches + 1) % self.snapshot_interval == 0
                and self.update_step >= self.warm_up_batches):
            # jax arrays are immutable -> storing the pytree == deepcopy(state_dict)
            self.snapshots.append(tuple(self.params))

    def forward_snapshots(self, x):
        # ALL snapshots in one pallas_call: weights stacked on the (blocked) grid axis.
        stacked = tuple(jnp.stack(ts, axis=0) for ts in zip(*self.snapshots))
        return _hmc_forward_stacked(x, *stacked)               # [S, N, N_CLASSES]


# ----------------------------- reference (glue) -----------------------------
def _reference_forward(x, params):
    w_conv, b_conv, w_fc, b_fc = params
    y = lax.conv_general_dilated(
        x.astype(jnp.float32), w_conv, window_strides=(1, 1), padding="SAME",
        dimension_numbers=("NCHW", "OIHW", "NCHW"))
    y = jnp.maximum(y + b_conv[None, :, None, None], 0.0)
    pooled = y.mean(axis=(2, 3))
    return pooled @ w_fc.T + b_fc


def _init_params(key):
    k1, k2, k3, k4 = jax.random.split(key, 4)
    w_conv = 0.1 * jax.random.normal(k1, (C_MID, C_IN, KH, KW), jnp.float32)
    b_conv = 0.1 * jax.random.normal(k2, (C_MID,), jnp.float32)
    w_fc = 0.1 * jax.random.normal(k3, (N_CLASSES, C_MID), jnp.float32)
    b_fc = 0.1 * jax.random.normal(k4, (N_CLASSES,), jnp.float32)
    return (w_conv, b_conv, w_fc, b_fc)


if __name__ == "__main__":
    key = jax.random.PRNGKey(0)
    kx, kp = jax.random.split(key)
    x = jax.random.normal(kx, (N_IMG, C_IN, H, W), jnp.float32)
    params = _init_params(kp)

    hmc = HMCModelPallas(params, n_total_batches=20, n_snapshots=3, warm_up_batches=5)

    out = jax.block_until_ready(hmc.forward(x))
    assert out.shape == (N_IMG, N_CLASSES) and out.dtype == jnp.float32

    # correctness check against a plain-JAX reference of the same wrapped model
    ref = jax.block_until_ready(_reference_forward(x, params))
    assert jnp.allclose(out, ref, atol=1e-4, rtol=1e-4)

    # exercise snapshot bookkeeping + single-pallas_call (blocked-grid) ensemble forward
    for _ in range(20):
        hmc.save_snapshot_step()
    snap_out = jax.block_until_ready(hmc.forward_snapshots(x))
    assert snap_out.shape == (len(hmc.snapshots), N_IMG, N_CLASSES)
    # weights were never updated, so every snapshot must reproduce the reference
    assert jnp.allclose(snap_out[0], ref, atol=1e-4, rtol=1e-4)
    assert jnp.allclose(snap_out[-1], ref, atol=1e-4, rtol=1e-4)

    print("KERNEL_OK")
</pallas_src>

<mosaic_0001>
module attributes {stable_mosaic.version = 11 : i64} {
  func.func @_hmc_fwd_kernel(%arg0: i32, %arg1: memref<36x512xf32, #tpu.memory_space<vmem>>, %arg2: memref<1x8x37xf32, #tpu.memory_space<vmem>>, %arg3: memref<1x10x9xf32, #tpu.memory_space<vmem>>, %arg4: memref<1x10x2xf32, #tpu.memory_space<vmem>>) attributes {dimension_semantics = [#tpu.dimension_semantics<parallel>], iteration_bounds = array<i64: 1>, scalar_prefetch = 0 : i64, scratch_operands = 0 : i64, tpu.core_type = #tpu.core_type<tc>, window_params = [{pipeline_mode = #tpu.pipeline_mode<synchronous>, transform_indices = @transform_0, window_bounds = array<i64: 36, 512>}, {transform_indices = @transform_1, window_bounds = array<i64: 1, 8, 37>}, {transform_indices = @transform_2, window_bounds = array<i64: 1, 10, 9>}, {transform_indices = @transform_3, window_bounds = array<i64: 1, 10, 2>}]} {
    %c0 = arith.constant 0 : index
    %c0_0 = arith.constant 0 : index
    %c0_1 = arith.constant 0 : index
    %0 = vector.load %arg2[%c0, %c0_0, %c0_1] : memref<1x8x37xf32, #tpu.memory_space<vmem>>, vector<1x8x36xf32>
    %1 = vector.shape_cast %0 : vector<1x8x36xf32> to vector<8x36xf32>
    %c0_2 = arith.constant 0 : index
    %c0_3 = arith.constant 0 : index
    %c36 = arith.constant 36 : index
    %2 = vector.load %arg2[%c0_2, %c0_3, %c36] : memref<1x8x37xf32, #tpu.memory_space<vmem>>, vector<1x8x1xf32>
    %3 = vector.shape_cast %2 : vector<1x8x1xf32> to vector<8x1xf32>
    %c0_4 = arith.constant 0 : index
    %c0_5 = arith.constant 0 : index
    %4 = vector.load %arg1[%c0_4, %c0_5] : memref<36x512xf32, #tpu.memory_space<vmem>>, vector<36x512xf32>
    %cst = arith.constant dense<0.000000e+00> : vector<8x512xf32>
    %5 = tpu.matmul %1, %4, %cst {dimension_numbers = #tpu.dot_dimension_numbers<[1], [0], [0], [1], [0, 0, 1, 1], [], []>} : vector<8x36xf32>, vector<36x512xf32>, vector<8x512xf32> -> vector<8x512xf32>
    %6 = vector.broadcast %3 : vector<8x1xf32> to vector<8x512xf32>
    %7 = arith.addf %5, %6 : vector<8x512xf32>
    %cst_6 = arith.constant 0.000000e+00 : f32
    %8 = vector.broadcast %cst_6 : f32 to vector<8x512xf32>
    %9 = arith.maximumf %7, %8 : vector<8x512xf32>
    %10 = vector.extract_strided_slice %9 {offsets = [0, 0], sizes = [8, 256], strides = [1, 1]} : vector<8x512xf32> to vector<8x256xf32>
    %cst_7 = arith.constant dense<0.000000e+00> : vector<8xf32>
    %11 = vector.multi_reduction <add>, %10, %cst_7 [1] : vector<8x256xf32> to vector<8xf32>
    %12 = vector.shape_cast %11 : vector<8xf32> to vector<8x1xf32>
    %13 = vector.extract_strided_slice %9 {offsets = [0, 256], sizes = [8, 256], strides = [1, 1]} : vector<8x512xf32> to vector<8x256xf32>
    %cst_8 = arith.constant dense<0.000000e+00> : vector<8xf32>
    %14 = vector.multi_reduction <add>, %13, %cst_8 [1] : vector<8x256xf32> to vector<8xf32>
    %15 = vector.shape_cast %14 : vector<8xf32> to vector<8x1xf32>
    %16 = tpu.concatenate %12, %15 in 1 : vector<8x1xf32>, vector<8x1xf32> -> vector<8x2xf32>
    %cst_9 = arith.constant 3.906250e-03 : f32
    %17 = vector.broadcast %cst_9 : f32 to vector<8x2xf32>
    %18 = arith.mulf %16, %17 : vector<8x2xf32>
    %c0_10 = arith.constant 0 : index
    %c0_11 = arith.constant 0 : index
    %c0_12 = arith.constant 0 : index
    %19 = vector.load %arg3[%c0_10, %c0_11, %c0_12] : memref<1x10x9xf32, #tpu.memory_space<vmem>>, vector<1x10x8xf32>
    %20 = vector.shape_cast %19 : vector<1x10x8xf32> to vector<10x8xf32>
    %c0_13 = arith.constant 0 : index
    %c0_14 = arith.constant 0 : index
    %c8 = arith.constant 8 : index
    %21 = vector.load %arg3[%c0_13, %c0_14, %c8] : memref<1x10x9xf32, #tpu.memory_space<vmem>>, vector<1x10x1xf32>
    %22 = vector.shape_cast %21 : vector<1x10x1xf32> to vector<10x1xf32>
    %cst_15 = arith.constant dense<0.000000e+00> : vector<10x2xf32>
    %23 = tpu.matmul %20, %18, %cst_15 {dimension_numbers = #tpu.dot_dimension_numbers<[1], [0], [0], [1], [0, 0, 1, 1], [], []>} : vector<10x8xf32>, vector<8x2xf32>, vector<10x2xf32> -> vector<10x2xf32>
    %24 = vector.broadcast %22 : vector<10x1xf32> to vector<10x2xf32>
    %25 = arith.addf %23, %24 : vector<10x2xf32>
    %c0_16 = arith.constant 0 : index
    %c0_17 = arith.constant 0 : index
    %c0_18 = arith.constant 0 : index
    %26 = vector.load %arg4[%c0_16, %c0_17, %c0_18] : memref<1x10x2xf32, #tpu.memory_space<vmem>>, vector<1x10x2xf32>
    %27 = vector.shape_cast %26 : vector<1x10x2xf32> to vector<10x2xf32>
    %28 = vector.shape_cast %25 : vector<10x2xf32> to vector<1x10x2xf32>
    tpu.vector_store %arg4[%c0_16, %c0_17, %c0_18], %28 {strides = array<i32>} : memref<1x10x2xf32, #tpu.memory_space<vmem>>, vector<1x10x2xf32>,
    return
  }
  func.func @transform_0(%arg0: i32) -> (i32, i32) {
    %c0_i32 = arith.constant 0 : i32
    %c0_i32_0 = arith.constant 0 : i32
    %c0_i32_1 = arith.constant 0 : i32
    return %c0_i32, %c0_i32_0 : i32, i32
  }
  func.func @transform_1(%arg0: i32) -> (i32, i32, i32) {
    %c0_i32 = arith.constant 0 : i32
    %c0_i32_0 = arith.constant 0 : i32
    %c0_i32_1 = arith.constant 0 : i32
    return %arg0, %c0_i32, %c0_i32_0 : i32, i32, i32
  }
  func.func @transform_2(%arg0: i32) -> (i32, i32, i32) {
    %c0_i32 = arith.constant 0 : i32
    %c0_i32_0 = arith.constant 0 : i32
    %c0_i32_1 = arith.constant 0 : i32
    return %arg0, %c0_i32, %c0_i32_0 : i32, i32, i32
  }
  func.func @transform_3(%arg0: i32) -> (i32, i32, i32) {
    %c0_i32 = arith.constant 0 : i32
    %c0_i32_0 = arith.constant 0 : i32
    %c0_i32_1 = arith.constant 0 : i32
    return %arg0, %c0_i32, %c0_i32_0 : i32, i32, i32
  }
}

</mosaic_0001>

<llo_original>
// kernel: _hmc_forward_stacked.1
$region0: #{_hmc_forward_stacked.1}
  #allocation0 [shape = 'u32[]', space=smem, size = 0x4, offset = 0x4, fixed_abs, tag = 'smem constant byte address 0x4 - core index']
  #allocation1 [shape = 'u32[72,128]{1,0:T(1,128)}', space=vmem, size = 0x9000, scoped, tag = 'internal scratch']
  %s0 = inlined_call_operand.vmem [shape: f32[36,512], index: 0, kind: input, shape index: {}]
  %s1 = inlined_call_operand.vmem [shape: f32[1,8,37], index: 1, kind: input, shape index: {}]
  %s2 = inlined_call_operand.vmem [shape: f32[1,10,9], index: 2, kind: input, shape index: {}]
  %s3 = inlined_call_operand.vmem [shape: f32[1,10,2], index: 3, kind: output, shape index: {}]
  %s4 = sld [smem:[#allocation0]]
  $region22: #{_hmc_forward_stacked.1} parent=0
    _
  %s6 = ssub.s32 1, %s4
  %s7 = scalar_select 0, %s6, %s4
  // Predicated region
  $region2: #{_hmc_forward_stacked.1} parent=0 // pred_check
    _
  $region3: #{_hmc_forward_stacked.1} parent=0 // pred_check_branch
    %9 = sbr.rel (0) target = $region5
  $region4: #{_hmc_forward_stacked.1} parent=0 // pred_region
    _
  $region5: #{_hmc_forward_stacked.1} parent=0 // pred_fallthru
    _
  // Predicated region
  $region6: #{_hmc_forward_stacked.1} parent=0 // pred_check
    _
  $region7: #{_hmc_forward_stacked.1} parent=0 // pred_check_branch
    %11 = sbr.rel (0) target = $region9
  $region8: #{_hmc_forward_stacked.1} parent=0 // pred_region
    _
  $region9: #{_hmc_forward_stacked.1} parent=0 // pred_fallthru
    _
  // Predicated region
  $region10: #{_hmc_forward_stacked.1} parent=0 // pred_check
    _
  $region11: #{_hmc_forward_stacked.1} parent=0 // pred_check_branch
    %13 = sbr.rel (0) target = $region13
  $region12: #{_hmc_forward_stacked.1} parent=0 // pred_region
    _
  $region13: #{_hmc_forward_stacked.1} parent=0 // pred_fallthru
    _
  %v14 = vld [vmem:[%s1] sm:$0xff]
  %v15 = vld [vmem:[%s0] sm:$0xff]
  %v16 = vld [vmem:[%s0 + $0x8] sm:$0xff]
  %v17 = vld [vmem:[%s0 + $0x10] sm:$0xff]
  %v18 = vld [vmem:[%s0 + $0x18] sm:$0xff]
  %v19 = vld [vmem:[%s0 + $0x20] sm:$0xff]
  %v20 = vld [vmem:[%s0 + $0x28] sm:$0xff]
  %v21 = vld [vmem:[%s0 + $0x30] sm:$0xff]
  %v22 = vld [vmem:[%s0 + $0x38] sm:$0xff]
  %v23 = vld [vmem:[%s0 + $0x40] sm:$0xff]
  %v24 = vld [vmem:[%s0 + $0x48] sm:$0xff]
  %v25 = vld [vmem:[%s0 + $0x50] sm:$0xff]
  %v26 = vld [vmem:[%s0 + $0x58] sm:$0xff]
  %v27 = vld [vmem:[%s0 + $0x60] sm:$0xff]
  %v28 = vld [vmem:[%s0 + $0x68] sm:$0xff]
  %v29 = vld [vmem:[%s0 + $0x70] sm:$0xff]
  %v30 = vld [vmem:[%s0 + $0x78] sm:$0xff]
  %v31 = vld [vmem:[%s0 + $0x80] sm:$0xf]
  %v32 = vld [vmem:[%s0 + $0x88] sm:$0xf]
  %v33 = vld [vmem:[%s0 + $0x90] sm:$0xf]
  %v34 = vld [vmem:[%s0 + $0x98] sm:$0xf]
  %36 = vset.pattern.permute.xlu0 36
  %37 = vperm.xlu0 %36, %v14
  %v38 = vpop.permute.xlu0 %37
  %vm40 = vcmask 293888
  %v41 = vsel %vm40, %v14, 0
  %vm43 = vcmask 1043456
  %v45 = vsel %vm43, %v31, 0
  %v48 = vsel %vm43, %v32, 0
  %v51 = vsel %vm43, %v33, 0
  %v54 = vsel %vm43, %v34, 0
  %56 = vmatpush.msra.mxu0 0.0
  %57 = vmatpush.msra.mxu0 0.0
  %58 = vmatpush.msra.mxu0 0.0
  %59 = vmatpush.msra.mxu0 0.0
  %60 = vmatpush.msra.mxu0 0.0
  %61 = vmatpush.msra.mxu0 0.0
  %62 = vmatpush.msra.mxu0 0.0
  %63 = vmatpush.msra.mxu0 0.0
  %64 = vmatpush.msra.mxu0 0.0
  %65 = vmatpush.msra.mxu0 0.0
  %66 = vmatpush.msra.mxu0 0.0
  %67 = vmatpush.msra.mxu0 %v45
  %68 = vmatpush.msra.mxu0 %v27
  %69 = vmatpush.msra.mxu0 %v23
  %70 = vmatpush.msra.mxu0 %v19
  %71 = vmatpush.msra.mxu0 %v15
  %72 = vmatmul.f32.gmra.mxu0 %v41
  %v73 = vpop.f32.mrf.mxu0
  %v74 = vadd.f32 %v38, %v73
  %75 = vdwg.mxu0
  %76 = vmatpush.msra.mxu0 0.0
  %77 = vmatpush.msra.mxu0 0.0
  %78 = vmatpush.msra.mxu0 0.0
  %79 = vmatpush.msra.mxu0 0.0
  %80 = vmatpush.msra.mxu0 0.0
  %81 = vmatpush.msra.mxu0 0.0
  %82 = vmatpush.msra.mxu0 0.0
  %83 = vmatpush.msra.mxu0 0.0
  %84 = vmatpush.msra.mxu0 0.0
  %85 = vmatpush.msra.mxu0 0.0
  %86 = vmatpush.msra.mxu0 0.0
  %87 = vmatpush.msra.mxu0 %v48
  %88 = vmatpush.msra.mxu0 %v28
  %89 = vmatpush.msra.mxu0 %v24
  %90 = vmatpush.msra.mxu0 %v20
  %91 = vmatpush.msra.mxu0 %v16
  %92 = vmatmul.f32.gmra.mxu0 %v41
  %v93 = vpop.f32.mrf.mxu0
  %v94 = vadd.f32 %v38, %v93
  %95 = vdwg.mxu0
  %96 = vmatpush.msra.mxu0 0.0
  %97 = vmatpush.msra.mxu0 0.0
  %98 = vmatpush.msra.mxu0 0.0
  %99 = vmatpush.msra.mxu0 0.0
  %100 = vmatpush.msra.mxu0 0.0
  %101 = vmatpush.msra.mxu0 0.0
  %102 = vmatpush.msra.mxu0 0.0
  %103 = vmatpush.msra.mxu0 0.0
  %104 = vmatpush.msra.mxu0 0.0
  %105 = vmatpush.msra.mxu0 0.0
  %106 = vmatpush.msra.mxu0 0.0
  %107 = vmatpush.msra.mxu0 %v51
  %108 = vmatpush.msra.mxu0 %v29
  %109 = vmatpush.msra.mxu0 %v25
  %110 = vmatpush.msra.mxu0 %v21
  %111 = vmatpush.msra.mxu0 %v17
  %112 = vmatmul.f32.gmra.mxu0 %v41
  %v113 = vpop.f32.mrf.mxu0
  %v114 = vadd.f32 %v38, %v113
  %115 = vdwg.mxu0
  %116 = vmatpush.msra.mxu0 0.0
  %117 = vmatpush.msra.mxu0 0.0
  %118 = vmatpush.msra.mxu0 0.0
  %119 = vmatpush.msra.mxu0 0.0
  %120 = vmatpush.msra.mxu0 0.0
  %121 = vmatpush.msra.mxu0 0.0
  %122 = vmatpush.msra.mxu0 0.0
  %123 = vmatpush.msra.mxu0 0.0
  %124 = vmatpush.msra.mxu0 0.0
  %125 = vmatpush.msra.mxu0 0.0
  %126 = vmatpush.msra.mxu0 0.0
  %127 = vmatpush.msra.mxu0 %v54
  %128 = vmatpush.msra.mxu0 %v30
  %129 = vmatpush.msra.mxu0 %v26
  %130 = vmatpush.msra.mxu0 %v22
  %131 = vmatpush.msra.mxu0 %v18
  %132 = vmatmul.f32.gmra.mxu0 %v41
  %v133 = vpop.f32.mrf.mxu0
  %v134 = vadd.f32 %v38, %v133
  %135 = vdwg.mxu0
  %v136 = vmax.f32 %v74, 0.0
  %v137 = vmax.f32 %v94, 0.0
  %v138 = vmax.f32 %v114, 0.0
  %v139 = vmax.f32 %v134, 0.0
  %v140 = vadd.f32 %v136, %v137
  %141 = vadd.xlane.f32.xlu0 %v140
  %v142 = vpop.xlane.xlu0 %141
  %v143 = vadd.f32 %v138, %v139
  %144 = vadd.xlane.f32.xlu0 %v143
  %v145 = vpop.xlane.xlu0 %144
  %vm146 = vcmask 7168
  %v147 = vsel %vm146, %v142, %v145
  %v148 = vmul.f32 %v147, 0.00390625
  %v149 = vld [vmem:[%s2] sm:$0xff]
  %v150 = vld [vmem:[%s2 + $0x8] sm:$0x3]
  %152 = vset.pattern.permute.xlu0 8
  %153 = vperm.xlu0 %152, %v149
  %v154 = vpop.permute.xlu0 %153
  %157 = vset.pattern.permute.xlu0 8
  %158 = vperm.xlu0 %157, %v150
  %v159 = vpop.permute.xlu0 %158
  %vm161 = vcmask 64512
  %v162 = vsel %vm161, %v149, 0
  %v164 = vsel %vm161, %v150, 0
  %166 = vmatpush.msra.mxu0 0.0
  %167 = vmatpush.msra.mxu0 0.0
  %168 = vmatpush.msra.mxu0 0.0
  %169 = vmatpush.msra.mxu0 0.0
  %170 = vmatpush.msra.mxu0 0.0
  %171 = vmatpush.msra.mxu0 0.0
  %172 = vmatpush.msra.mxu0 0.0
  %173 = vmatpush.msra.mxu0 0.0
  %174 = vmatpush.msra.mxu0 0.0
  %175 = vmatpush.msra.mxu0 0.0
  %176 = vmatpush.msra.mxu0 0.0
  %177 = vmatpush.msra.mxu0 0.0
  %178 = vmatpush.msra.mxu0 0.0
  %179 = vmatpush.msra.mxu0 0.0
  %180 = vmatpush.msra.mxu0 0.0
  %181 = vmatpush.msra.mxu0 %v148
  %182 = vmatmul.f32.gmra.mxu0 %v162
  %v183 = vpop.f32.mrf.mxu0
  %v184 = vadd.f32 %v154, %v183
  %185 = vmatmul.f32.gmra.mxu0 %v164
  %v186 = vpop.f32.mrf.mxu0
  %v187 = vadd.f32 %v159, %v186
  %188 = vdwg.mxu0
  %vm189 = vcmask 15360
  %190 = vst.msk [vmem:[%s3] sm:$0xff] %vm189, %v184
  %vm191 = vcmask 9216
  %192 = vst.msk [vmem:[%s3 + $0x8] sm:$0x3] %vm191, %v187
  // Predicated region
  $region14: #{_hmc_forward_stacked.1} parent=0 // pred_check
    _
  $region15: #{_hmc_forward_stacked.1} parent=0 // pred_check_branch
    %194 = sbr.rel (0) target = $region17
  $region16: #{_hmc_forward_stacked.1} parent=0 // pred_region
    _
  $region17: #{_hmc_forward_stacked.1} parent=0 // pred_fallthru
    _
  // Predicated region
  $region18: #{_hmc_forward_stacked.1} parent=0 // pred_check
    _
  $region19: #{_hmc_forward_stacked.1} parent=0 // pred_check_branch
    %196 = sbr.rel (0) target = $region21
  $region20: #{_hmc_forward_stacked.1} parent=0 // pred_region
    _
  $region21: #{_hmc_forward_stacked.1} parent=0 // pred_fallthru
    _

</llo_original>
